<compile_context>
chip_gen: v7x
topology: tpu7x:2x2x1
jax: 0.10.0
libtpu: 0.0.40
codegen_flags: <defaults>
</compile_context>

<pallas_src>
import functools

import jax
import jax.numpy as jnp
from jax.experimental import pallas as pl
from jax.experimental.pallas import tpu as pltpu


def _copy_kernel(x_ref, o_ref):
    # Identity "decoder": one tile load, one tile store. Purely mem/overhead bound.
    o_ref[...] = x_ref[...]


def _sublane(dtype):
    """Sublane packing requirement: 8 rows for 4-byte, 16 for 2-byte, 32 for 1-byte dtypes."""
    itemsize = jnp.dtype(dtype).itemsize
    return max(8, 32 // itemsize)


def _lane_dense_2d(total, dtype):
    """Pick (rows, cols) with cols a multiple of 128 (prefer 512-1024) and rows a
    multiple of the dtype's sublane packing factor, so every vreg store is an
    unmasked vst.  Returns None if no such factorization exists."""
    sub = _sublane(dtype)
    for cols in (512, 1024, 256, 128):
        if total % cols == 0 and (total // cols) % sub == 0:
            return (total // cols, cols)
    return None


@functools.lru_cache(maxsize=None)
def _build_identity_copy(shape, dtype_name):
    """Build (once per shape/dtype) a jitted Pallas identity-copy for arrays of `shape`."""
    dtype = jnp.dtype(dtype_name)
    total = 1
    for d in shape:
        total *= int(d)
    nbytes = total * dtype.itemsize
    cost = pl.CostEstimate(flops=0, transcendentals=0, bytes_accessed=2 * nbytes)

    layout = _lane_dense_2d(total, dtype)

    if layout is None:
        # Awkward size: flatten to one long lane run (full-array block is exempt
        # from the (8,128) divisibility rule), at most a single masked tail.
        sub = _sublane(dtype)
        shape2d = (sub, total // sub) if total % sub == 0 else (1, total)
        copy2d = pl.pallas_call(
            _copy_kernel,
            out_shape=jax.ShapeDtypeStruct(shape2d, dtype),
            in_specs=[pl.BlockSpec(shape2d, lambda: (0, 0))],
            out_specs=pl.BlockSpec(shape2d, lambda: (0, 0)),
            cost_estimate=cost,
        )
    else:
        rows, cols = layout
        block_bytes = rows * cols * dtype.itemsize
        if block_bytes <= (2 << 20):
            # Small input: single full-array block, no grid, no per-step overhead.
            shape2d = (rows, cols)
            copy2d = pl.pallas_call(
                _copy_kernel,
                out_shape=jax.ShapeDtypeStruct(shape2d, dtype),
                in_specs=[pl.BlockSpec(shape2d, lambda: (0, 0))],
                out_specs=pl.BlockSpec(shape2d, lambda: (0, 0)),
                cost_estimate=cost,
            )
        else:
            # Large input: tile over rows (512-row blocks when possible) so the
            # double-buffered in+out footprint stays well under scoped VMEM on
            # v5e/v6e/v7x, and let the runtime shard the loop across v7x's 2 TCs.
            shape2d = (rows, cols)
            block_rows = next(
                br for br in (512, 256, 128, 64, 32, 16, 8, 1) if rows % br == 0
            )
            copy2d = pl.pallas_call(
                _copy_kernel,
                out_shape=jax.ShapeDtypeStruct(shape2d, dtype),
                grid=(rows // block_rows,),
                in_specs=[pl.BlockSpec((block_rows, cols), lambda i: (i, 0))],
                out_specs=pl.BlockSpec((block_rows, cols), lambda i: (i, 0)),
                compiler_params=pltpu.CompilerParams(
                    dimension_semantics=("parallel",)
                ),
                cost_estimate=cost,
            )

    @jax.jit
    def run(x):
        return copy2d(x.reshape(shape2d)).reshape(shape)

    return run


def pallas_identity_copy(x):
    """Materialize a bit-exact copy of x via the (cached, jitted) Pallas kernel."""
    return _build_identity_copy(tuple(x.shape), jnp.dtype(x.dtype).name)(x)


def wnet_fixture_forward(x, *, materialize_decoder=False):
    """Returns (encoder_out, decoder_out) == (x, x).

    Default (materialize_decoder=False): both outputs are pure aliases of the input
    buffer — exactly the PyTorch semantics (same tensor object returned twice) and
    zero HBM traffic / zero kernel launches (JAX arrays are immutable, so sharing
    the buffer is safe).

    materialize_decoder=True: the decoder output is a physically distinct copy
    produced by the Pallas identity kernel (encoder stays a pure alias).
    """
    enc = x
    dec = pallas_identity_copy(x) if materialize_decoder else x
    return enc, dec


# Deterministic parameters for the (unused-in-forward) mock Conv3d(1, 1, kernel_size=1).
# Kept only for shape fidelity with the PyTorch module's __init__.
MOCK_CONV_WEIGHT = jnp.full((1, 1, 1, 1, 1), 0.5, dtype=jnp.float32)  # (out_c, in_c, kD, kH, kW)
MOCK_CONV_BIAS = jnp.zeros((1,), dtype=jnp.float32)
# TODO(synk): mock_conv is never invoked in WNetFixture.forward, so it is not part of the kernel.


if __name__ == "__main__":
    key = jax.random.PRNGKey(0)
    # Conv3d(1,1,1) implies 5-D NCDHW input with C=1.
    x = jax.random.normal(key, (2, 1, 8, 16, 16), dtype=jnp.float32)

    # Fast, faithful path: pure aliasing, no kernel launch.
    enc_alias, dec_alias = wnet_fixture_forward(x)
    assert enc_alias is x and dec_alias is x

    # Pallas path: exercise the kernel once and verify bit-exactness.
    enc_out, dec_out = wnet_fixture_forward(x, materialize_decoder=True)
    jax.block_until_ready(enc_out)
    jax.block_until_ready(dec_out)

    assert enc_out.shape == x.shape and dec_out.shape == x.shape
    assert jnp.array_equal(enc_out, x) and jnp.array_equal(dec_out, x)
    print("KERNEL_OK")
</pallas_src>

<mosaic_0001>
module attributes {stable_mosaic.version = 11 : i64} {
  func.func @_copy_kernel(%arg0: memref<8x512xf32, #tpu.memory_space<vmem>>, %arg1: memref<8x512xf32, #tpu.memory_space<vmem>>) attributes {dimension_semantics = [], scalar_prefetch = 0 : i64, scratch_operands = 0 : i64, tpu.core_type = #tpu.core_type<tc>} {
    %c0 = arith.constant 0 : index
    %c0_0 = arith.constant 0 : index
    %0 = vector.load %arg0[%c0, %c0_0] : memref<8x512xf32, #tpu.memory_space<vmem>>, vector<8x512xf32>
    %c0_1 = arith.constant 0 : index
    %c0_2 = arith.constant 0 : index
    %1 = vector.load %arg1[%c0_1, %c0_2] : memref<8x512xf32, #tpu.memory_space<vmem>>, vector<8x512xf32>
    tpu.vector_store %arg1[%c0_1, %c0_2], %0 {strides = array<i32>} : memref<8x512xf32, #tpu.memory_space<vmem>>, vector<8x512xf32>,
    return
  }
}

</mosaic_0001>

<llo_original>
// kernel: run.1
$region0: #{run.1}
  #allocation0 [shape = 'u32[]', space=smem, size = 0x4, offset = 0x4, fixed_abs, tag = 'smem constant byte address 0x4 - core index']
  #allocation1 [shape = 'u32[144,128]{1,0:T(1,128)}', space=vmem, size = 0x12000, scoped, tag = 'internal scratch']
  %s0 = inlined_call_operand.vmem [shape: f32[8,512], index: 0, kind: input, shape index: {}]
  %s1 = inlined_call_operand.vmem [shape: f32[8,512], index: 1, kind: output, shape index: {}]
  %s2 = sld [smem:[#allocation0]]
  $region14: #{run.1} parent=0
    _
  %s4 = ssub.s32 1, %s2
  %s5 = scalar_select 0, %s4, %s2
  // Predicated region
  $region2: #{run.1} parent=0 // pred_check
    _
  $region3: #{run.1} parent=0 // pred_check_branch
    %7 = sbr.rel (0) target = $region5
  $region4: #{run.1} parent=0 // pred_region
    _
  $region5: #{run.1} parent=0 // pred_fallthru
    _
  %v8 = vld [vmem:[%s0] sm:$0xff]
  %v9 = vld [vmem:[%s0 + $0x8] sm:$0xff]
  %v10 = vld [vmem:[%s0 + $0x10] sm:$0xff]
  %v11 = vld [vmem:[%s0 + $0x18] sm:$0xff]
  %12 = vst [vmem:[%s1] sm:$0xff] %v8
  %13 = vst [vmem:[%s1 + $0x8] sm:$0xff] %v9
  %14 = vst [vmem:[%s1 + $0x10] sm:$0xff] %v10
  %15 = vst [vmem:[%s1 + $0x18] sm:$0xff] %v11
  // Predicated region
  $region6: #{run.1} parent=0 // pred_check
    _
  $region7: #{run.1} parent=0 // pred_check_branch
    %17 = sbr.rel (0) target = $region9
  $region8: #{run.1} parent=0 // pred_region
    _
  $region9: #{run.1} parent=0 // pred_fallthru
    _
  // Predicated region
  $region10: #{run.1} parent=0 // pred_check
    _
  $region11: #{run.1} parent=0 // pred_check_branch
    %19 = sbr.rel (0) target = $region13
  $region12: #{run.1} parent=0 // pred_region
    _
  $region13: #{run.1} parent=0 // pred_fallthru
    _

</llo_original>
